<compile_context>
chip_gen: v6e
topology: v6e:2x2x1
jax: 0.10.0
libtpu: 0.0.40
codegen_flags: <defaults>
</compile_context>

<pallas_src>
import functools

import jax
import jax.numpy as jnp
import numpy as np
from jax import lax
from jax.experimental import pallas as pl
from jax.experimental.pallas import tpu as pltpu


# ----------------------------------------------------------------------------
# Fused channel-attention kernel: Bt batch elements per grid step.
# ----------------------------------------------------------------------------
def _ca_kernel(x_ref, w1_ref, b1_ref, w2_ref, b2_ref, o_ref, *, inv_hw):
    # x_ref : (Bt, C, HWp)  -- spatial flattened (zero-padded) on the lane axis
    # w1_ref: (Cr, C)   b1_ref: (1, Cr)
    # w2_ref: (C, Cr)   b2_ref: (1, C)
    # o_ref : (Bt, C, HWp)
    x = x_ref[...]

    # Global average pool over the spatial (lane) axis; accumulate in f32 and
    # divide by the TRUE H*W (padded columns are zero, so they add nothing).
    pooled = jnp.sum(x.astype(jnp.float32), axis=2) * inv_hw            # (Bt, C)

    # Squeeze: Conv1x1(C -> Cr) == (Bt, C) contracted with (Cr, C) on C.
    z = lax.dot_general(pooled, w1_ref[...], (((1,), (1,)), ((), ())),
                        preferred_element_type=jnp.float32) + b1_ref[...]  # (Bt, Cr)
    z = jnp.maximum(z, 0.0)

    # Excite: Conv1x1(Cr -> C) == (Bt, Cr) contracted with (C, Cr) on Cr.
    s = lax.dot_general(z, w2_ref[...], (((1,), (1,)), ((), ())),
                        preferred_element_type=jnp.float32) + b2_ref[...]  # (Bt, C)
    s = jax.nn.sigmoid(s)

    # Per-channel rescale, broadcast along lanes (VPU), lane-dense store.
    o_ref[...] = x * s[:, :, None].astype(x.dtype)


# ----------------------------------------------------------------------------
# Wrapper: layout plumbing, per-generation block sizing, pallas_call.
# ----------------------------------------------------------------------------
def ca_layer(x_nchw, w1, b1, w2, b2):
    """CALayer forward.

    x_nchw: (N, C, H, W)
    w1: (Cr, C)  b1: (Cr,) or (Cr, 1)   -- conv1 (channel -> channel//reduction)
    w2: (C, Cr)  b2: (C,)  or (C, 1)    -- conv2 (channel//reduction -> channel)
    """
    N, C, H, W = x_nchw.shape
    Cr = w1.shape[0]
    HW = H * W
    dtype = x_nchw.dtype
    itemsize = x_nchw.dtype.itemsize

    # ---- lane-dense spatial axis: flatten HxW, pad to a multiple of 128 -----
    x2 = x_nchw.reshape(N, C, HW)
    HWp = ((HW + 127) // 128) * 128
    if HWp != HW:
        # One extra XLA pass over x, but avoids masked vst.msk partial stores
        # inside the kernel (largest measured single lever on the store side).
        x2 = jnp.pad(x2, ((0, 0), (0, 0), (0, HWp - HW)))

    b1_2 = b1.reshape(1, Cr)
    b2_2 = b2.reshape(1, C)

    # ---- generation-aware VMEM budget (v7x: 64 MiB/TC, v5e/v6e: 128 MiB) ----
    try:
        vmem_cap = int(pltpu.get_tpu_info().vmem_capacity_bytes)
    except Exception:  # pragma: no cover - conservative fallback
        vmem_cap = 64 * 1024 * 1024
    vmem_budget = int(0.75 * vmem_cap)

    # ---- batch-tile: move ~1-8 MiB per grid step, capped by the VMEM budget --
    per_img = C * HWp * itemsize
    max_block = max(per_img, min(vmem_budget // 6, 8 * 1024 * 1024))
    bt_cap = max(1, min(N, max_block // per_img))
    divisors = [d for d in range(1, N + 1) if N % d == 0 and d <= bt_cap]
    bt = max(divisors)
    # Keep >= 2 grid steps when possible so ("parallel",) feeds both v7x cores.
    two_core = [d for d in divisors if N // d >= 2]
    if N >= 2 and two_core:
        bt = max(two_core)
    grid_n = N // bt

    block_bytes = bt * per_img
    weight_bytes = (Cr * C + C * Cr + Cr + C) * 4
    vmem_limit = int(min(vmem_budget,
                         max(16 * 1024 * 1024,
                             6 * block_bytes + 4 * weight_bytes)))

    kernel = functools.partial(_ca_kernel, inv_hw=1.0 / float(HW))

    out = pl.pallas_call(
        kernel,
        out_shape=jax.ShapeDtypeStruct((N, C, HWp), dtype),
        grid=(grid_n,),
        in_specs=[
            pl.BlockSpec((bt, C, HWp), lambda n: (n, 0, 0)),
            pl.BlockSpec((Cr, C), lambda n: (0, 0)),
            pl.BlockSpec((1, Cr), lambda n: (0, 0)),
            pl.BlockSpec((C, Cr), lambda n: (0, 0)),
            pl.BlockSpec((1, C), lambda n: (0, 0)),
        ],
        out_specs=pl.BlockSpec((bt, C, HWp), lambda n: (n, 0, 0)),
        compiler_params=pltpu.CompilerParams(
            dimension_semantics=("parallel",),
            vmem_limit_bytes=vmem_limit),
    )(x2, w1, b1_2, w2, b2_2)

    if HWp != HW:
        out = out[:, :, :HW]
    return out.reshape(N, C, H, W)


# ----------------------------------------------------------------------------
# Pure-JAX reference (matches PyTorch CALayer semantics).
# ----------------------------------------------------------------------------
def ref_ca_layer(x, w1, b1, w2, b2):
    y = x.mean(axis=(2, 3))                                  # (N, C)
    z = jax.nn.relu(y @ w1.T + b1.reshape(1, -1))            # (N, Cr)
    s = jax.nn.sigmoid(z @ w2.T + b2.reshape(1, -1))         # (N, C)
    return x * s[:, :, None, None]


if __name__ == "__main__":
    # channel must be divisible by reduction (=16), so use channel=64 -> Cr=4.
    N, C, H, W = 2, 64, 16, 16
    reduction = 16
    Cr = C // reduction

    key = jax.random.PRNGKey(0)
    ks = jax.random.split(key, 5)
    x = jax.random.normal(ks[0], (N, C, H, W), jnp.float32)
    # PyTorch Conv2d weight layouts [out, in, 1, 1] squeezed; biases are [out].
    w1 = 0.1 * jax.random.normal(ks[1], (Cr, C), jnp.float32)   # conv1: C -> Cr
    b1 = 0.1 * jax.random.normal(ks[2], (Cr,), jnp.float32)
    w2 = 0.1 * jax.random.normal(ks[3], (C, Cr), jnp.float32)   # conv2: Cr -> C
    b2 = 0.1 * jax.random.normal(ks[4], (C,), jnp.float32)

    out = jax.block_until_ready(ca_layer(x, w1, b1, w2, b2))
    assert out.shape == (N, C, H, W), out.shape

    ref = jax.block_until_ready(ref_ca_layer(x, w1, b1, w2, b2))
    np.testing.assert_allclose(np.asarray(out), np.asarray(ref),
                               rtol=1e-4, atol=1e-4)
    print("KERNEL_OK")
</pallas_src>

<mosaic_0001>
module attributes {stable_mosaic.version = 11 : i64} {
  func.func @_ca_kernel(%arg0: i32, %arg1: memref<1x64x256xf32, #tpu.memory_space<vmem>>, %arg2: memref<4x64xf32, #tpu.memory_space<vmem>>, %arg3: memref<1x4xf32, #tpu.memory_space<vmem>>, %arg4: memref<64x4xf32, #tpu.memory_space<vmem>>, %arg5: memref<1x64xf32, #tpu.memory_space<vmem>>, %arg6: memref<1x64x256xf32, #tpu.memory_space<vmem>>) attributes {dimension_semantics = [#tpu.dimension_semantics<parallel>], iteration_bounds = array<i64: 2>, scalar_prefetch = 0 : i64, scratch_operands = 0 : i64, tpu.core_type = #tpu.core_type<tc>, window_params = [{transform_indices = @transform_0, window_bounds = array<i64: 1, 64, 256>}, {pipeline_mode = #tpu.pipeline_mode<synchronous>, transform_indices = @transform_1, window_bounds = array<i64: 4, 64>}, {pipeline_mode = #tpu.pipeline_mode<synchronous>, transform_indices = @transform_2, window_bounds = array<i64: 1, 4>}, {pipeline_mode = #tpu.pipeline_mode<synchronous>, transform_indices = @transform_3, window_bounds = array<i64: 64, 4>}, {pipeline_mode = #tpu.pipeline_mode<synchronous>, transform_indices = @transform_4, window_bounds = array<i64: 1, 64>}, {transform_indices = @transform_5, window_bounds = array<i64: 1, 64, 256>}]} {
    %c0 = arith.constant 0 : index
    %c0_0 = arith.constant 0 : index
    %c0_1 = arith.constant 0 : index
    %0 = vector.load %arg1[%c0, %c0_0, %c0_1] : memref<1x64x256xf32, #tpu.memory_space<vmem>>, vector<1x64x256xf32>
    %cst = arith.constant dense<0.000000e+00> : vector<1x64xf32>
    %1 = vector.multi_reduction <add>, %0, %cst [2] : vector<1x64x256xf32> to vector<1x64xf32>
    %cst_2 = arith.constant 3.906250e-03 : f32
    %2 = vector.broadcast %cst_2 : f32 to vector<1x64xf32>
    %3 = arith.mulf %1, %2 : vector<1x64xf32>
    %c0_3 = arith.constant 0 : index
    %c0_4 = arith.constant 0 : index
    %4 = vector.load %arg2[%c0_3, %c0_4] : memref<4x64xf32, #tpu.memory_space<vmem>>, vector<4x64xf32>
    %cst_5 = arith.constant dense<0.000000e+00> : vector<1x4xf32>
    %5 = tpu.matmul %3, %4, %cst_5 {dimension_numbers = #tpu.dot_dimension_numbers<[1], [1], [0], [0], [0, 0, 1, 0], [], []>} : vector<1x64xf32>, vector<4x64xf32>, vector<1x4xf32> -> vector<1x4xf32>
    %c0_6 = arith.constant 0 : index
    %c0_7 = arith.constant 0 : index
    %6 = vector.load %arg3[%c0_6, %c0_7] : memref<1x4xf32, #tpu.memory_space<vmem>>, vector<1x4xf32>
    %7 = arith.addf %5, %6 : vector<1x4xf32>
    %cst_8 = arith.constant 0.000000e+00 : f32
    %8 = vector.broadcast %cst_8 : f32 to vector<1x4xf32>
    %9 = arith.maximumf %7, %8 : vector<1x4xf32>
    %c0_9 = arith.constant 0 : index
    %c0_10 = arith.constant 0 : index
    %10 = vector.load %arg4[%c0_9, %c0_10] : memref<64x4xf32, #tpu.memory_space<vmem>>, vector<64x4xf32>
    %cst_11 = arith.constant dense<0.000000e+00> : vector<1x64xf32>
    %11 = tpu.matmul %9, %10, %cst_11 {dimension_numbers = #tpu.dot_dimension_numbers<[1], [1], [0], [0], [0, 0, 1, 0], [], []>} : vector<1x4xf32>, vector<64x4xf32>, vector<1x64xf32> -> vector<1x64xf32>
    %c0_12 = arith.constant 0 : index
    %c0_13 = arith.constant 0 : index
    %12 = vector.load %arg5[%c0_12, %c0_13] : memref<1x64xf32, #tpu.memory_space<vmem>>, vector<1x64xf32>
    %13 = arith.addf %11, %12 : vector<1x64xf32>
    %14 = arith.negf %13 : vector<1x64xf32>
    %15 = math.exp %14 : vector<1x64xf32>
    %cst_14 = arith.constant 1.000000e+00 : f32
    %16 = vector.broadcast %cst_14 : f32 to vector<1x64xf32>
    %17 = arith.addf %16, %15 : vector<1x64xf32>
    %18 = arith.divf %16, %17 : vector<1x64xf32>
    %19 = vector.shape_cast %18 : vector<1x64xf32> to vector<1x64x1xf32>
    %20 = vector.broadcast %19 : vector<1x64x1xf32> to vector<1x64x256xf32>
    %21 = arith.mulf %0, %20 : vector<1x64x256xf32>
    %c0_15 = arith.constant 0 : index
    %c0_16 = arith.constant 0 : index
    %c0_17 = arith.constant 0 : index
    %22 = vector.load %arg6[%c0_15, %c0_16, %c0_17] : memref<1x64x256xf32, #tpu.memory_space<vmem>>, vector<1x64x256xf32>
    tpu.vector_store %arg6[%c0_15, %c0_16, %c0_17], %21 {strides = array<i32>} : memref<1x64x256xf32, #tpu.memory_space<vmem>>, vector<1x64x256xf32>,
    return
  }
  func.func @transform_0(%arg0: i32) -> (i32, i32, i32) {
    %c0_i32 = arith.constant 0 : i32
    %c0_i32_0 = arith.constant 0 : i32
    %c0_i32_1 = arith.constant 0 : i32
    return %arg0, %c0_i32, %c0_i32_0 : i32, i32, i32
  }
  func.func @transform_1(%arg0: i32) -> (i32, i32) {
    %c0_i32 = arith.constant 0 : i32
    %c0_i32_0 = arith.constant 0 : i32
    %c0_i32_1 = arith.constant 0 : i32
    return %c0_i32, %c0_i32_0 : i32, i32
  }
  func.func @transform_2(%arg0: i32) -> (i32, i32) {
    %c0_i32 = arith.constant 0 : i32
    %c0_i32_0 = arith.constant 0 : i32
    %c0_i32_1 = arith.constant 0 : i32
    return %c0_i32, %c0_i32_0 : i32, i32
  }
  func.func @transform_3(%arg0: i32) -> (i32, i32) {
    %c0_i32 = arith.constant 0 : i32
    %c0_i32_0 = arith.constant 0 : i32
    %c0_i32_1 = arith.constant 0 : i32
    return %c0_i32, %c0_i32_0 : i32, i32
  }
  func.func @transform_4(%arg0: i32) -> (i32, i32) {
    %c0_i32 = arith.constant 0 : i32
    %c0_i32_0 = arith.constant 0 : i32
    %c0_i32_1 = arith.constant 0 : i32
    return %c0_i32, %c0_i32_0 : i32, i32
  }
  func.func @transform_5(%arg0: i32) -> (i32, i32, i32) {
    %c0_i32 = arith.constant 0 : i32
    %c0_i32_0 = arith.constant 0 : i32
    %c0_i32_1 = arith.constant 0 : i32
    return %arg0, %c0_i32, %c0_i32_0 : i32, i32, i32
  }
}

</mosaic_0001>

<llo_original>
// kernel: tpu_custom_call.1
$region0: #{tpu_custom_call.1}
  #allocation0 [shape = 'u32[]', space=smem, size = 0x4, offset = 0x4, fixed_abs, tag = 'smem constant byte address 0x4 - core index']
  #allocation1 [shape = 'u32[144,128]{1,0:T(1,128)}', space=vmem, size = 0x12000, scoped, tag = 'internal scratch']
  %s0 = inlined_call_operand.hbm [shape: f32[2,64,256], index: 0, kind: input, shape index: {}]
  %s1 = inlined_call_operand.vmem [shape: f32[4,64], index: 1, kind: input, shape index: {}]
  %s2 = inlined_call_operand.vmem [shape: f32[1,4], index: 2, kind: input, shape index: {}]
  %s3 = inlined_call_operand.vmem [shape: f32[64,4], index: 3, kind: input, shape index: {}]
  %s4 = inlined_call_operand.vmem [shape: f32[1,64], index: 4, kind: input, shape index: {}]
  %s5 = inlined_call_operand.hbm [shape: f32[2,64,256], index: 5, kind: output, shape index: {}]
  %s6 = sld [smem:[#allocation0]]
  $region57: #{tpu_custom_call.1} parent=0
    _
  %s8 = ssub.s32 1, %s6
  %s9 = scalar_select 0, %s8, %s6
  $region1: #{tpu_custom_call.1} parent=0
    #allocation2 [shape = 'u8[131072]{0}', space=vmem, size = 0x20000, scoped, tag = 'input window, operand 0']
    #allocation3 [shape = 's32[2]{0}', space=sflag, size = 0x8, scoped, tag = 'scoped memory for tpu_custom_call.1']
    #allocation4 [shape = 's32[2]{0}', space=sflag, size = 0x8, scoped, tag = 'scoped memory for tpu_custom_call.1']
    #allocation5 [shape = 'u8[131072]{0}', space=vmem, size = 0x20000, scoped, tag = 'output window, operand 0']
    %10 = vsyncpa [#allocation3], 0
    %s11 = scalar_lea.sflag [#allocation3], 1
    %12 = vsyncpa %s11, 0
    %13 = vsyncpa [#allocation4], 0
    %s14 = scalar_lea.sflag [#allocation4], 1
    %15 = vsyncpa %s14, 0
    loop: start=0, step=1, limit=4
    $region2: #{tpu_custom_call.1} parent=1 // loop_pre_header
      _
    $region3: #{tpu_custom_call.1} parent=1 // loop_header
      %s17 = sphi 0, %s21
      %p18 = scmp.ge.s32.totalorder %s17, 4
      %s27 = sphi 0, %s29
      %s30 = sphi 0, %s27
      %s31 = sphi 0, %s30
      %s47 = sphi 0, %s31
      %s51 = sphi 0, %s51
      %s53 = sphi 0, %s51
      %s54 = sphi 0, %s53
      %s68 = sphi 0, %s54
      %s72 = sphi 0, %s72
      %s74 = sphi 0, %s72
      %s75 = sphi 0, %s74
      %s89 = sphi 0, %s75
      %s93 = sphi 0, %s93
      %s95 = sphi 0, %s93
      %s96 = sphi 0, %s95
      %s110 = sphi 0, %s96
      %s114 = sphi 0, %s114
      %s116 = sphi 0, %s114
      %s117 = sphi 0, %s116
      %s131 = sphi 0, %s117
      %s137 = sphi 0, %s139
      %s140 = sphi 0, %s137
      %s141 = sphi 0, %s140
      %s157 = sphi 0, %s141
    $region4: #{tpu_custom_call.1} parent=1 // loop_header_branch
      %20 = sbr.rel (%p18) target = $region8
    $region5: #{tpu_custom_call.1} parent=1 // loop_body
      %s22 = ssub.s32 %s17, 1
      %s23 = ssub.s32 %s17, 2
      %s24 = sadd.s32 %s17, 1
      %s25 = ssub.s32 %s17, %s24
      %p26 = scmp.eq.s32.totalorder %s25, 0
      %s28 = sadd.s32 %s27, 1
      %s29 = scalar_select %p26, %s27, %s28
      %p32 = pneg %p26
      %p33 = scmp.eq.s32.totalorder %s17, 1
      %p34 = por %p32, %p33
      %p35 = scmp.ne.s32.totalorder %s27, %s30
      %p36 = scmp.eq.s32.totalorder %s17, 0
      %p37 = por %p35, %p36
      %p38 = scmp.ne.s32.totalorder %s27, %s30
      %p39 = scmp.eq.s32.totalorder %s22, 1
      %p40 = por %p38, %p39
      %p41 = scmp.ne.s32.totalorder %s30, %s31
      %p42 = scmp.eq.s32.totalorder %s22, 0
      %p43 = por %p41, %p42
      %p44 = scmp.ne.s32.totalorder %s30, %s31
      %p45 = scmp.eq.s32.totalorder %s23, 1
      %p46 = por %p44, %p45
      %p48 = scmp.ne.s32.totalorder %s31, %s47
      %p49 = scmp.eq.s32.totalorder %s23, 0
      %p50 = por %p48, %p49
      %s52 = sadd.s32 %s51, 1
      %p55 = scmp.eq.s32.totalorder %s17, 1
      %p56 = scmp.ne.s32.totalorder %s51, %s53
      %p57 = scmp.eq.s32.totalorder %s17, 0
      %p58 = por %p56, %p57
      %p59 = scmp.ne.s32.totalorder %s51, %s53
      %p60 = scmp.eq.s32.totalorder %s22, 1
      %p61 = por %p59, %p60
      %p62 = scmp.ne.s32.totalorder %s53, %s54
      %p63 = scmp.eq.s32.totalorder %s22, 0
      %p64 = por %p62, %p63
      %p65 = scmp.ne.s32.totalorder %s53, %s54
      %p66 = scmp.eq.s32.totalorder %s23, 1
      %p67 = por %p65, %p66
      %p69 = scmp.ne.s32.totalorder %s54, %s68
      %p70 = scmp.eq.s32.totalorder %s23, 0
      %p71 = por %p69, %p70
      %s73 = sadd.s32 %s72, 1
      %p76 = scmp.eq.s32.totalorder %s17, 1
      %p77 = scmp.ne.s32.totalorder %s72, %s74
      %p78 = scmp.eq.s32.totalorder %s17, 0
      %p79 = por %p77, %p78
      %p80 = scmp.ne.s32.totalorder %s72, %s74
      %p81 = scmp.eq.s32.totalorder %s22, 1
      %p82 = por %p80, %p81
      %p83 = scmp.ne.s32.totalorder %s74, %s75
      %p84 = scmp.eq.s32.totalorder %s22, 0
      %p85 = por %p83, %p84
      %p86 = scmp.ne.s32.totalorder %s74, %s75
      %p87 = scmp.eq.s32.totalorder %s23, 1
      %p88 = por %p86, %p87
      %p90 = scmp.ne.s32.totalorder %s75, %s89
      %p91 = scmp.eq.s32.totalorder %s23, 0
      %p92 = por %p90, %p91
      %s94 = sadd.s32 %s93, 1
      %p97 = scmp.eq.s32.totalorder %s17, 1
      %p98 = scmp.ne.s32.totalorder %s93, %s95
      %p99 = scmp.eq.s32.totalorder %s17, 0
      %p100 = por %p98, %p99
      %p101 = scmp.ne.s32.totalorder %s93, %s95
      %p102 = scmp.eq.s32.totalorder %s22, 1
      %p103 = por %p101, %p102
      %p104 = scmp.ne.s32.totalorder %s95, %s96
      %p105 = scmp.eq.s32.totalorder %s22, 0
      %p106 = por %p104, %p105
      %p107 = scmp.ne.s32.totalorder %s95, %s96
      %p108 = scmp.eq.s32.totalorder %s23, 1
      %p109 = por %p107, %p108
      %p111 = scmp.ne.s32.totalorder %s96, %s110
      %p112 = scmp.eq.s32.totalorder %s23, 0
      %p113 = por %p111, %p112
      %s115 = sadd.s32 %s114, 1
      %p118 = scmp.eq.s32.totalorder %s17, 1
      %p119 = scmp.ne.s32.totalorder %s114, %s116
      %p120 = scmp.eq.s32.totalorder %s17, 0
      %p121 = por %p119, %p120
      %p122 = scmp.ne.s32.totalorder %s114, %s116
      %p123 = scmp.eq.s32.totalorder %s22, 1
      %p124 = por %p122, %p123
      %p125 = scmp.ne.s32.totalorder %s116, %s117
      %p126 = scmp.eq.s32.totalorder %s22, 0
      %p127 = por %p125, %p126
      %p128 = scmp.ne.s32.totalorder %s116, %s117
      %p129 = scmp.eq.s32.totalorder %s23, 1
      %p130 = por %p128, %p129
      %p132 = scmp.ne.s32.totalorder %s117, %s131
      %p133 = scmp.eq.s32.totalorder %s23, 0
      %p134 = por %p132, %p133
      %s135 = ssub.s32 %s17, %s24
      %p136 = scmp.eq.s32.totalorder %s135, 0
      %s138 = sadd.s32 %s137, 1
      %s139 = scalar_select %p136, %s137, %s138
      %p142 = pneg %p136
      %p143 = scmp.eq.s32.totalorder %s17, 1
      %p144 = por %p142, %p143
      %p145 = scmp.ne.s32.totalorder %s137, %s140
      %p146 = scmp.eq.s32.totalorder %s17, 0
      %p147 = por %p145, %p146
      %p148 = scmp.ne.s32.totalorder %s137, %s140
      %p149 = scmp.eq.s32.totalorder %s22, 1
      %p150 = por %p148, %p149
      %p151 = scmp.ne.s32.totalorder %s140, %s141
      %p152 = scmp.eq.s32.totalorder %s22, 0
      %p153 = por %p151, %p152
      %p154 = scmp.ne.s32.totalorder %s140, %s141
      %p155 = scmp.eq.s32.totalorder %s23, 1
      %p156 = por %p154, %p155
      %p158 = scmp.ne.s32.totalorder %s141, %s157
      %p159 = scmp.eq.s32.totalorder %s23, 0
      %p160 = por %p158, %p159
      %p161 = scmp.le.s32.totalorder 1, %s17
      %p162 = scmp.lt.s32.totalorder %s17, 3
      %p163 = pnand %p161, %p162
      %p164 = pneg %p163
      // Predicated region
      $region9: #{tpu_custom_call.1} parent=5 // pred_check
        _
      $region10: #{tpu_custom_call.1} parent=5 // pred_check_branch
        %166 = sbr.rel (%p163) target = $region12
      $region11: #{tpu_custom_call.1} parent=5 // pred_region
        %s167 = ssub.s32 %s17, 1
        // Predicated region
        $region13: #{tpu_custom_call.1} parent=11 // pred_check
          %p168 = pneg %p64
        $region14: #{tpu_custom_call.1} parent=11 // pred_check_branch
          %170 = sbr.rel (%p168) target = $region16
        $region15: #{tpu_custom_call.1} parent=11 // pred_region
          _
        $region16: #{tpu_custom_call.1} parent=11 // pred_fallthru
          _
        // Predicated region
        $region17: #{tpu_custom_call.1} parent=11 // pred_check
          %p171 = pneg %p85
        $region18: #{tpu_custom_call.1} parent=11 // pred_check_branch
          %173 = sbr.rel (%p171) target = $region20
        $region19: #{tpu_custom_call.1} parent=11 // pred_region
          _
        $region20: #{tpu_custom_call.1} parent=11 // pred_fallthru
          _
        // Predicated region
        $region21: #{tpu_custom_call.1} parent=11 // pred_check
          %p174 = pneg %p106
        $region22: #{tpu_custom_call.1} parent=11 // pred_check_branch
          %176 = sbr.rel (%p174) target = $region24
        $region23: #{tpu_custom_call.1} parent=11 // pred_region
          _
        $region24: #{tpu_custom_call.1} parent=11 // pred_fallthru
          _
        // Predicated region
        $region25: #{tpu_custom_call.1} parent=11 // pred_check
          %p177 = pneg %p127
        $region26: #{tpu_custom_call.1} parent=11 // pred_check_branch
          %179 = sbr.rel (%p177) target = $region28
        $region27: #{tpu_custom_call.1} parent=11 // pred_region
          _
        $region28: #{tpu_custom_call.1} parent=11 // pred_fallthru
          _
      $region12: #{tpu_custom_call.1} parent=5 // pred_fallthru
        _
      %p180 = scmp.lt.s32.totalorder %s17, 2
      // Predicated region
      $region29: #{tpu_custom_call.1} parent=5 // pred_check
        %p181 = pneg %p180
      $region30: #{tpu_custom_call.1} parent=5 // pred_check_branch
        %183 = sbr.rel (%p181) target = $region32
      $region31: #{tpu_custom_call.1} parent=5 // pred_region
        // Predicated region
        $region33: #{tpu_custom_call.1} parent=31 // pred_check
          %p184 = pneg %p37
        $region34: #{tpu_custom_call.1} parent=31 // pred_check_branch
          %186 = sbr.rel (%p184) target = $region36
        $region35: #{tpu_custom_call.1} parent=31 // pred_region
          %s187 = sand.u32 %s27, 1
          %s188 = scalar_lea.sflag [#allocation3], %s187
          %s189 = sand.u32 %s27, 1
          %s190 = smul.addr %s189, 128
          %s191 = scalar_lea.vmem [#allocation2], %s190
          %s193 = ssub.s32 2048, 2048
          %194 = vsyncadd %s188, %s193
          %s195 = smul.addr %s17, 16
          %s196 = smul.addr %s195, 128
          %s197 = scalar_lea.hbm %s0, %s196
          %s198 = sshll.u32 %s191, 4
          %s199 = int_to_ptr.vmem [resolvable:$true] %s198
          %204 = dma.hbm_to_vmem [thread:$0]  %s197, 2048, %s199, %s188, 256, 256, 16
        $region36: #{tpu_custom_call.1} parent=31 // pred_fallthru
          _
      $region32: #{tpu_custom_call.1} parent=5 // pred_fallthru
        _
      %p205 = scmp.le.s32.totalorder 1, %s17
      %p206 = scmp.lt.s32.totalorder %s17, 3
      %p207 = pnand %p205, %p206
      %p208 = pneg %p207
      // Predicated region
      $region37: #{tpu_custom_call.1} parent=5 // pred_check
        _
      $region38: #{tpu_custom_call.1} parent=5 // pred_check_branch
        %210 = sbr.rel (%p207) target = $region40
      $region39: #{tpu_custom_call.1} parent=5 // pred_region
        %s211 = ssub.s32 %s17, 1
        %s212 = sand.u32 %s30, 1
        %s213 = scalar_lea.sflag [#allocation3], %s212
        %s214 = sand.u32 %s30, 1
        %s215 = smul.addr %s214, 128
        %s216 = scalar_lea.vmem [#allocation2], %s215
        // Predicated region
        $region41: #{tpu_custom_call.1} parent=39 // pred_check
          %p217 = pneg %p43
        $region42: #{tpu_custom_call.1} parent=39 // pred_check_branch
          %219 = sbr.rel (%p217) target = $region44
        $region43: #{tpu_custom_call.1} parent=39 // pred_region
          %220 = dma.done %s213, 2048
        $region44: #{tpu_custom_call.1} parent=39 // pred_fallthru
          _
        %s221 = sand.u32 %s30, 1
        %s222 = scalar_lea.sflag [#allocation3], %s221
        %s223 = sand.u32 %s30, 1
        %s224 = smul.addr %s223, 128
        %s225 = scalar_lea.vmem [#allocation2], %s224
        %p226 = pneg %p43
        %p227 = pneg %p40
        %p228 = pneg %p64
        %p229 = pneg %p61
        %p230 = pneg %p85
        %p231 = pneg %p82
        %p232 = pneg %p106
        %p233 = pneg %p103
        %p234 = pneg %p127
        %p235 = pneg %p124
        %p236 = pneg %p153
        %p237 = pneg %p150
        %s238 = sand.u32 %s140, 1
        %s239 = scalar_lea.sflag [#allocation4], %s238
        %s240 = sand.u32 %s140, 1
        %s241 = smul.addr %s240, 128
        %s242 = scalar_lea.vmem [#allocation5], %s241
        %v243 = vld [vmem:[%s216] sm:$0xff]
        %v244 = vld [vmem:[%s216 + $0x8] sm:$0xff]
        %v245 = vld [vmem:[%s216 + $0x10] sm:$0xff]
        %v246 = vld [vmem:[%s216 + $0x18] sm:$0xff]
        %v247 = vld [vmem:[%s216 + $0x20] sm:$0xff]
        %v248 = vld [vmem:[%s216 + $0x28] sm:$0xff]
        %v249 = vld [vmem:[%s216 + $0x30] sm:$0xff]
        %v250 = vld [vmem:[%s216 + $0x38] sm:$0xff]
        %v251 = vld [vmem:[%s216 + $0x40] sm:$0xff]
        %v252 = vld [vmem:[%s216 + $0x48] sm:$0xff]
        %v253 = vld [vmem:[%s216 + $0x50] sm:$0xff]
        %v254 = vld [vmem:[%s216 + $0x58] sm:$0xff]
        %v255 = vld [vmem:[%s216 + $0x60] sm:$0xff]
        %v256 = vld [vmem:[%s216 + $0x68] sm:$0xff]
        %v257 = vld [vmem:[%s216 + $0x70] sm:$0xff]
        %v258 = vld [vmem:[%s216 + $0x78] sm:$0xff]
        %v259 = vadd.f32 %v243, %v244
        %260 = vadd.xlane.f32.xlu0 %v259
        %v261 = vpop.xlane.xlu0 %260
        %v262 = vadd.f32 %v245, %v246
        %263 = vadd.xlane.f32.xlu0 %v262
        %v264 = vpop.xlane.xlu0 %263
        %v265 = vadd.f32 %v247, %v248
        %266 = vadd.xlane.f32.xlu0 %v265
        %v267 = vpop.xlane.xlu0 %266
        %v268 = vadd.f32 %v249, %v250
        %269 = vadd.xlane.f32.xlu0 %v268
        %v270 = vpop.xlane.xlu0 %269
        %v271 = vadd.f32 %v251, %v252
        %272 = vadd.xlane.f32.xlu0 %v271
        %v273 = vpop.xlane.xlu0 %272
        %v274 = vadd.f32 %v253, %v254
        %275 = vadd.xlane.f32.xlu0 %v274
        %v276 = vpop.xlane.xlu0 %275
        %v277 = vadd.f32 %v255, %v256
        %278 = vadd.xlane.f32.xlu0 %v277
        %v279 = vpop.xlane.xlu0 %278
        %v280 = vadd.f32 %v257, %v258
        %281 = vadd.xlane.f32.xlu0 %v280
        %v282 = vpop.xlane.xlu0 %281
        %v283 = vmul.f32 %v261, 0.00390625
        %v284 = vmul.f32 %v264, 0.00390625
        %v285 = vmul.f32 %v267, 0.00390625
        %v286 = vmul.f32 %v270, 0.00390625
        %v287 = vmul.f32 %v273, 0.00390625
        %v288 = vmul.f32 %v276, 0.00390625
        %v289 = vmul.f32 %v279, 0.00390625
        %v290 = vmul.f32 %v282, 0.00390625
        %v291 = vld [vmem:[%s1] sm:$0xf]
        %v292 = vld [vmem:[%s2] sm:$0x1]
        %v301 = vlaneseq
        %v302 = vand.u32 %v301, 127
        %v303 = vlaneseq
        %v304 = vshrl.u32 %v303, 7
        %v305 = vsub.s32 %v302, %v304
        %v306 = vrot.slane %v283, %v305
        %v307 = vadd.s32 %v302, 4294967288
        %v308 = vlaneseq
        %v309 = vshrl.u32 %v308, 7
        %v310 = vsub.s32 %v307, %v309
        %v311 = vrot.slane %v284, %v310
        %vm312 = vcmask 130112
        %v313 = vsel %vm312, %v311, %v306
        %v314 = vadd.s32 %v302, 4294967280
        %v315 = vlaneseq
        %v316 = vshrl.u32 %v315, 7
        %v317 = vsub.s32 %v314, %v316
        %v318 = vrot.slane %v285, %v317
        %vm319 = vcmask 195712
        %v320 = vsel %vm319, %v318, %v313
        %v321 = vadd.s32 %v302, 4294967272
        %v322 = vlaneseq
        %v323 = vshrl.u32 %v322, 7
        %v324 = vsub.s32 %v321, %v323
        %v325 = vrot.slane %v286, %v324
        %vm326 = vcmask 261312
        %v327 = vsel %vm326, %v325, %v320
        %v328 = vadd.s32 %v302, 4294967264
        %v329 = vlaneseq
        %v330 = vshrl.u32 %v329, 7
        %v331 = vsub.s32 %v328, %v330
        %v332 = vrot.slane %v287, %v331
        %vm333 = vcmask 326912
        %v334 = vsel %vm333, %v332, %v327
        %v335 = vadd.s32 %v302, 4294967256
        %v336 = vlaneseq
        %v337 = vshrl.u32 %v336, 7
        %v338 = vsub.s32 %v335, %v337
        %v339 = vrot.slane %v288, %v338
        %vm340 = vcmask 392512
        %v341 = vsel %vm340, %v339, %v334
        %v342 = vadd.s32 %v302, 4294967248
        %v343 = vlaneseq
        %v344 = vshrl.u32 %v343, 7
        %v345 = vsub.s32 %v342, %v344
        %v346 = vrot.slane %v289, %v345
        %vm347 = vcmask 458112
        %v348 = vsel %vm347, %v346, %v341
        %v349 = vadd.s32 %v302, 4294967240
        %v350 = vlaneseq
        %v351 = vshrl.u32 %v350, 7
        %v352 = vsub.s32 %v349, %v351
        %v353 = vrot.slane %v290, %v352
        %vm354 = vcmask 523712
        %v355 = vsel %vm354, %v353, %v348
        %vm356 = vcmask 523264
        %v357 = vsel %vm356, %v355, 0
        %v360 = vsel %vm356, %v291, 0
        %362 = vmatprep.subr.mxu0 0.0
        %363 = vmatpush1.xpose.msra.mxu0 0.0
        %364 = vmatprep.subr.mxu0 0.0
        %365 = vmatpush1.xpose.msra.mxu0 0.0
        %366 = vmatprep.subr.mxu0 0.0
        %367 = vmatpush1.xpose.msra.mxu0 0.0
        %368 = vmatprep.subr.mxu0 0.0
        %369 = vmatpush1.xpose.msra.mxu0 0.0
        %370 = vmatprep.subr.mxu0 0.0
        %371 = vmatpush1.xpose.msra.mxu0 0.0
        %372 = vmatprep.subr.mxu0 0.0
        %373 = vmatpush1.xpose.msra.mxu0 0.0
        %374 = vmatprep.subr.mxu0 0.0
        %375 = vmatpush1.xpose.msra.mxu0 0.0
        %376 = vmatprep.subr.mxu0 0.0
        %377 = vmatpush1.xpose.msra.mxu0 0.0
        %378 = vmatprep.subr.mxu0 0.0
        %379 = vmatpush1.xpose.msra.mxu0 0.0
        %380 = vmatprep.subr.mxu0 0.0
        %381 = vmatpush1.xpose.msra.mxu0 0.0
        %382 = vmatprep.subr.mxu0 0.0
        %383 = vmatpush1.xpose.msra.mxu0 0.0
        %384 = vmatprep.subr.mxu0 0.0
        %385 = vmatpush1.xpose.msra.mxu0 0.0
        %386 = vmatprep.subr.mxu0 0.0
        %387 = vmatpush1.xpose.msra.mxu0 0.0
        %388 = vmatprep.subr.mxu0 0.0
        %389 = vmatpush1.xpose.msra.mxu0 0.0
        %390 = vmatprep.subr.mxu0 0.0
        %391 = vmatpush1.xpose.msra.mxu0 0.0
        %392 = vmatprep.subr.mxu0 0.0
        %393 = vmatpush1.xpose.msra.mxu0 %v360
        %394 = vmatprep.subr.mxu0 0.0
        %395 = vmatpush2.xpose.msra.mxu0 0.0
        %396 = vmatprep.subr.mxu0 0.0
        %397 = vmatpush2.xpose.msra.mxu0 0.0
        %398 = vmatprep.subr.mxu0 0.0
        %399 = vmatpush2.xpose.msra.mxu0 0.0
        %400 = vmatprep.subr.mxu0 0.0
        %401 = vmatpush2.xpose.msra.mxu0 0.0
        %402 = vmatprep.subr.mxu0 0.0
        %403 = vmatpush2.xpose.msra.mxu0 0.0
        %404 = vmatprep.subr.mxu0 0.0
        %405 = vmatpush2.xpose.msra.mxu0 0.0
        %406 = vmatprep.subr.mxu0 0.0
        %407 = vmatpush2.xpose.msra.mxu0 0.0
        %408 = vmatprep.subr.mxu0 0.0
        %409 = vmatpush2.xpose.msra.mxu0 0.0
        %410 = vmatprep.subr.mxu0 0.0
        %411 = vmatpush2.xpose.msra.mxu0 0.0
        %412 = vmatprep.subr.mxu0 0.0
        %413 = vmatpush2.xpose.msra.mxu0 0.0
        %414 = vmatprep.subr.mxu0 0.0
        %415 = vmatpush2.xpose.msra.mxu0 0.0
        %416 = vmatprep.subr.mxu0 0.0
        %417 = vmatpush2.xpose.msra.mxu0 0.0
        %418 = vmatprep.subr.mxu0 0.0
        %419 = vmatpush2.xpose.msra.mxu0 0.0
        %420 = vmatprep.subr.mxu0 0.0
        %421 = vmatpush2.xpose.msra.mxu0 0.0
        %422 = vmatprep.subr.mxu0 0.0
        %423 = vmatpush2.xpose.msra.mxu0 0.0
        %424 = vmatprep.subr.mxu0 0.0
        %425 = vmatpush2.xpose.msra.mxu0 0.0
        %426 = vmatprep.mubr.f32.mxu0 0.0
        %427 = vmatmul.mubr.f32.gmra.mxu0 %v357
        %v428 = vpop.f32.mrf.mxu0
        %v429 = vadd.f32 %v292, %v428
        %v430 = vpop.f32.mrf.mxu0
        %431 = vdwg.mxu0
        %v432 = vmax.f32 %v429, 0.0
        %v433 = vld [vmem:[%s3] sm:$0xff]
        %v434 = vld [vmem:[%s3 + $0x8] sm:$0xff]
        %v435 = vld [vmem:[%s3 + $0x10] sm:$0xff]
        %v436 = vld [vmem:[%s3 + $0x18] sm:$0xff]
        %v437 = vld [vmem:[%s3 + $0x20] sm:$0xff]
        %v438 = vld [vmem:[%s3 + $0x28] sm:$0xff]
        %v439 = vld [vmem:[%s3 + $0x30] sm:$0xff]
        %v440 = vld [vmem:[%s3 + $0x38] sm:$0xff]
        %v441 = vld [vmem:[%s4] sm:$0x1]
        %vm442 = vcmask 31744
        %v444 = vsel %vm442, %v432, 0
        %v447 = vsel %vm442, %v433, 0
        %v450 = vsel %vm442, %v434, 0
        %v453 = vsel %vm442, %v435, 0
        %v456 = vsel %vm442, %v436, 0
        %v459 = vsel %vm442, %v437, 0
        %v462 = vsel %vm442, %v438, 0
        %v465 = vsel %vm442, %v439, 0
        %v468 = vsel %vm442, %v440, 0
        %470 = vmatprep.subr.mxu0 0.0
        %471 = vmatpush1.xpose.msra.mxu0 0.0
        %472 = vmatprep.subr.mxu0 0.0
        %473 = vmatpush1.xpose.msra.mxu0 0.0
        %474 = vmatprep.subr.mxu0 0.0
        %475 = vmatpush1.xpose.msra.mxu0 0.0
        %476 = vmatprep.subr.mxu0 0.0
        %477 = vmatpush1.xpose.msra.mxu0 0.0
        %478 = vmatprep.subr.mxu0 0.0
        %479 = vmatpush1.xpose.msra.mxu0 0.0
        %480 = vmatprep.subr.mxu0 0.0
        %481 = vmatpush1.xpose.msra.mxu0 0.0
        %482 = vmatprep.subr.mxu0 0.0
        %483 = vmatpush1.xpose.msra.mxu0 0.0
        %484 = vmatprep.subr.mxu0 0.0
        %485 = vmatpush1.xpose.msra.mxu0 0.0
        %486 = vmatprep.subr.mxu0 0.0
        %487 = vmatpush1.xpose.msra.mxu0 %v468
        %488 = vmatprep.subr.mxu0 0.0
        %489 = vmatpush1.xpose.msra.mxu0 %v465
        %490 = vmatprep.subr.mxu0 0.0
        %491 = vmatpush1.xpose.msra.mxu0 %v462
        %492 = vmatprep.subr.mxu0 0.0
        %493 = vmatpush1.xpose.msra.mxu0 %v459
        %494 = vmatprep.subr.mxu0 0.0
        %495 = vmatpush1.xpose.msra.mxu0 %v456
        %496 = vmatprep.subr.mxu0 0.0
        %497 = vmatpush1.xpose.msra.mxu0 %v453
        %498 = vmatprep.subr.mxu0 0.0
        %499 = vmatpush1.xpose.msra.mxu0 %v450
        %500 = vmatprep.subr.mxu0 0.0
        %501 = vmatpush1.xpose.msra.mxu0 %v447
        %502 = vmatprep.subr.mxu0 0.0
        %503 = vmatpush2.xpose.msra.mxu0 0.0
        %504 = vmatprep.subr.mxu0 0.0
        %505 = vmatpush2.xpose.msra.mxu0 0.0
        %506 = vmatprep.subr.mxu0 0.0
        %507 = vmatpush2.xpose.msra.mxu0 0.0
        %508 = vmatprep.subr.mxu0 0.0
        %509 = vmatpush2.xpose.msra.mxu0 0.0
        %510 = vmatprep.subr.mxu0 0.0
        %511 = vmatpush2.xpose.msra.mxu0 0.0
        %512 = vmatprep.subr.mxu0 0.0
        %513 = vmatpush2.xpose.msra.mxu0 0.0
        %514 = vmatprep.subr.mxu0 0.0
        %515 = vmatpush2.xpose.msra.mxu0 0.0
        %516 = vmatprep.subr.mxu0 0.0
        %517 = vmatpush2.xpose.msra.mxu0 0.0
        %518 = vmatprep.subr.mxu0 0.0
        %519 = vmatpush2.xpose.msra.mxu0 0.0
        %520 = vmatprep.subr.mxu0 0.0
        %521 = vmatpush2.xpose.msra.mxu0 0.0
        %522 = vmatprep.subr.mxu0 0.0
        %523 = vmatpush2.xpose.msra.mxu0 0.0
        %524 = vmatprep.subr.mxu0 0.0
        %525 = vmatpush2.xpose.msra.mxu0 0.0
        %526 = vmatprep.subr.mxu0 0.0
        %527 = vmatpush2.xpose.msra.mxu0 0.0
        %528 = vmatprep.subr.mxu0 0.0
        %529 = vmatpush2.xpose.msra.mxu0 0.0
        %530 = vmatprep.subr.mxu0 0.0
        %531 = vmatpush2.xpose.msra.mxu0 0.0
        %532 = vmatprep.subr.mxu0 0.0
        %533 = vmatpush2.xpose.msra.mxu0 0.0
        %534 = vmatprep.mubr.f32.mxu0 0.0
        %535 = vmatmul.mubr.f32.gmra.mxu0 %v444
        %v536 = vpop.f32.mrf.mxu0
        %v537 = vadd.f32 %v441, %v536
        %v538 = vpop.f32.mrf.mxu0
        %539 = vdwg.mxu0
        %v540 = vxor.u32 %v537, 2147483648
        %v541 = vmul.f32 %v540, 1.442695
        %v542 = vpow.pop %v541
        %v543 = vadd.f32 %v542, 1.0
        %v544 = vrcp.pop %v543
        %v545 = vmul.f32 1.0, %v544
        %v546 = vlaneseq
        %v547 = vshrl.u32 %v546, 7
        %v548 = vsub.s32 0, %v547
        %v549 = vrot.slane %v545, %v548
        %551 = vbcast.lane.b32.xlu0 %v549, 256
        %v552 = vpop.permute.xlu0 %551
        %s554 = sor.u32 256, 8
        %555 = vbcast.lane.b32.xlu0 %v549, %s554
        %v556 = vpop.permute.xlu0 %555
        %s558 = sor.u32 256, 16
        %559 = vbcast.lane.b32.xlu0 %v549, %s558
        %v560 = vpop.permute.xlu0 %559
        %s562 = sor.u32 256, 24
        %563 = vbcast.lane.b32.xlu0 %v549, %s562
        %v564 = vpop.permute.xlu0 %563
        %s566 = sor.u32 256, 32
        %567 = vbcast.lane.b32.xlu0 %v549, %s566
        %v568 = vpop.permute.xlu0 %567
        %s570 = sor.u32 256, 40
        %571 = vbcast.lane.b32.xlu0 %v549, %s570
        %v572 = vpop.permute.xlu0 %571
        %s574 = sor.u32 256, 48
        %575 = vbcast.lane.b32.xlu0 %v549, %s574
        %v576 = vpop.permute.xlu0 %575
        %s578 = sor.u32 256, 56
        %579 = vbcast.lane.b32.xlu0 %v549, %s578
        %v580 = vpop.permute.xlu0 %579
        %v581 = vmul.f32 %v243, %v552
        %v582 = vmul.f32 %v244, %v552
        %v583 = vmul.f32 %v245, %v556
        %v584 = vmul.f32 %v246, %v556
        %v585 = vmul.f32 %v247, %v560
        %v586 = vmul.f32 %v248, %v560
        %v587 = vmul.f32 %v249, %v564
        %v588 = vmul.f32 %v250, %v564
        %v589 = vmul.f32 %v251, %v568
        %v590 = vmul.f32 %v252, %v568
        %v591 = vmul.f32 %v253, %v572
        %v592 = vmul.f32 %v254, %v572
        %v593 = vmul.f32 %v255, %v576
        %v594 = vmul.f32 %v256, %v576
        %v595 = vmul.f32 %v257, %v580
        %v596 = vmul.f32 %v258, %v580
        %597 = vst [vmem:[%s242] sm:$0xff] %v581
        %598 = vst [vmem:[%s242 + $0x8] sm:$0xff] %v582
        %599 = vst [vmem:[%s242 + $0x10] sm:$0xff] %v583
        %600 = vst [vmem:[%s242 + $0x18] sm:$0xff] %v584
        %601 = vst [vmem:[%s242 + $0x20] sm:$0xff] %v585
        %602 = vst [vmem:[%s242 + $0x28] sm:$0xff] %v586
        %603 = vst [vmem:[%s242 + $0x30] sm:$0xff] %v587
        %604 = vst [vmem:[%s242 + $0x38] sm:$0xff] %v588
        %605 = vst [vmem:[%s242 + $0x40] sm:$0xff] %v589
        %606 = vst [vmem:[%s242 + $0x48] sm:$0xff] %v590
        %607 = vst [vmem:[%s242 + $0x50] sm:$0xff] %v591
        %608 = vst [vmem:[%s242 + $0x58] sm:$0xff] %v592
        %609 = vst [vmem:[%s242 + $0x60] sm:$0xff] %v593
        %610 = vst [vmem:[%s242 + $0x68] sm:$0xff] %v594
        %611 = vst [vmem:[%s242 + $0x70] sm:$0xff] %v595
        %612 = vst [vmem:[%s242 + $0x78] sm:$0xff] %v596
        %s613 = sand.u32 %s140, 1
        %s614 = scalar_lea.sflag [#allocation4], %s613
        %s615 = sand.u32 %s140, 1
        %s616 = smul.addr %s615, 128
        %s617 = scalar_lea.vmem [#allocation5], %s616
        // Predicated region
        $region45: #{tpu_custom_call.1} parent=39 // pred_check
          %p618 = pneg %p150
        $region46: #{tpu_custom_call.1} parent=39 // pred_check_branch
          %620 = sbr.rel (%p618) target = $region48
        $region47: #{tpu_custom_call.1} parent=39 // pred_region
          %s622 = ssub.s32 2048, 2048
          %623 = vsyncadd %s614, %s622
          %s624 = smul.addr %s22, 16
          %s625 = smul.addr %s624, 128
          %s626 = scalar_lea.hbm %s5, %s625
          %s627 = sshll.u32 %s617, 4
          %s628 = int_to_ptr.vmem [resolvable:$true] %s627
          %633 = dma.vmem_to_hbm [thread:$0]  %s628, 2048, %s626, %s614, 256, 256, 16
        $region48: #{tpu_custom_call.1} parent=39 // pred_fallthru
          _
      $region40: #{tpu_custom_call.1} parent=5 // pred_fallthru
        _
      %p634 = scmp.le.s32.totalorder 2, %s17
      // Predicated region
      $region49: #{tpu_custom_call.1} parent=5 // pred_check
        %p635 = pneg %p634
      $region50: #{tpu_custom_call.1} parent=5 // pred_check_branch
        %637 = sbr.rel (%p635) target = $region52
      $region51: #{tpu_custom_call.1} parent=5 // pred_region
        %s638 = ssub.s32 %s17, 2
        // Predicated region
        $region53: #{tpu_custom_call.1} parent=51 // pred_check
          %p639 = pneg %p156
        $region54: #{tpu_custom_call.1} parent=51 // pred_check_branch
          %641 = sbr.rel (%p639) target = $region56
        $region55: #{tpu_custom_call.1} parent=51 // pred_region
          %s642 = sand.u32 %s141, 1
          %s643 = scalar_lea.sflag [#allocation4], %s642
          %s644 = sand.u32 %s141, 1
          %s645 = smul.addr %s644, 128
          %s646 = scalar_lea.vmem [#allocation5], %s645
          %647 = dma.done %s643, 2048
        $region56: #{tpu_custom_call.1} parent=51 // pred_fallthru
          _
      $region52: #{tpu_custom_call.1} parent=5 // pred_fallthru
        _
    $region6: #{tpu_custom_call.1} parent=1 // loop_footer
      %s21 = sadd.s32 1, %s17
    $region7: #{tpu_custom_call.1} parent=1 // loop_footer_branch
      %16 = sbr.rel target = $region3
    $region8: #{tpu_custom_call.1} parent=1 // loop_exit
      _
    %648 = vsyncpa [#allocation3], 1
    %s649 = scalar_lea.sflag [#allocation3], 1
    %650 = vsyncpa %s649, 1
    %651 = vsyncpa [#allocation4], 1
    %s652 = scalar_lea.sflag [#allocation4], 1
    %653 = vsyncpa %s652, 1

</llo_original>
